<compile_context>
chip_gen: v6e
topology: v6e:2x2x1
jax: 0.10.0
libtpu: 0.0.40
codegen_flags: <defaults>
</compile_context>

<pallas_src>
import functools

import jax
import jax.numpy as jnp
from jax.experimental import pallas as pl
from jax.experimental.pallas import tpu as pltpu

_TILE_ROWS = 256        # dst-row tile for the large-N path (MXU-native M on v6e/v7x)
_TILED_MIN_ROWS = 512   # below this, the fused single-block kernel wins
_VMEM_LIMIT = 32 << 20


def _round_up(v, m):
    return (v + m - 1) // m * m


def _full_spec(shape):
    # Whole array as a single resident VMEM block (block_shape == array shape,
    # so it is exempt from the (8,128) divisibility rule).
    return pl.BlockSpec(shape, lambda: tuple(0 for _ in shape))


# -------------------- fused small-graph kernel (gridless) ------------------- #
def fused_graphsage_kernel(x_ref, adj_ref, invdeg_ref,
                           wl1_ref, wr1_ref, b1_ref,
                           wl2_ref, wr2_ref, b2_ref, o_ref):
    """Two fused SAGEConv(mean) layers; all intermediates stay in VMEM.

    x_ref    [Np, C]   bf16  node features (rows padded to bf16 sublane mult.)
    adj_ref  [Np, Np]  bf16  raw in-edge counts: adj[dst, src] = multiplicity
    invdeg   [Np, 1]   f32   1 / max(in_degree, 1)
    wl*/wr*  [.., H]   bf16  SAGEConv lin_l / lin_r weights
    b*       [1, H]    f32
    o_ref    [Np, H]   f32
    """
    x = x_ref[...]
    adj = adj_ref[...]
    inv_deg = invdeg_ref[...]

    # ---- layer 1: SAGEConv(in -> hidden) + bias + relu ---------------------
    agg1 = jnp.dot(adj, x, preferred_element_type=jnp.float32) * inv_deg   # f32 mean
    h = (jnp.dot(agg1.astype(jnp.bfloat16), wl1_ref[...],
                 preferred_element_type=jnp.float32)
         + jnp.dot(x, wr1_ref[...], preferred_element_type=jnp.float32)
         + b1_ref[...])
    h = jnp.maximum(h, 0.0)
    # TODO(synk): dropout(p=0.2) is identity in eval mode; a training-mode mask
    # would use pltpu.prng_seed / pltpu.prng_random_bits here.
    h_bf = h.astype(jnp.bfloat16)

    # ---- layer 2: SAGEConv(hidden -> hidden), no activation -----------------
    # NOTE: padded phantom rows (>= n) have h = relu(b1), but their adjacency
    # columns are zero so they never feed real rows here.
    agg2 = jnp.dot(adj, h_bf, preferred_element_type=jnp.float32) * inv_deg
    out = (jnp.dot(agg2.astype(jnp.bfloat16), wl2_ref[...],
                   preferred_element_type=jnp.float32)
           + jnp.dot(h_bf, wr2_ref[...], preferred_element_type=jnp.float32)
           + b2_ref[...])

    o_ref[...] = out.astype(o_ref.dtype)


def fused_graphsage(x_p, adj_p, inv_p, wl1, wr1, b1, wl2, wr2, b2):
    np_, c = x_p.shape
    h = wl1.shape[1]
    flops = (2 * np_ * np_ * c          # adj @ x
             + 4 * np_ * c * h          # agg@Wl1 + x@Wr1
             + 2 * np_ * np_ * h        # adj @ h
             + 4 * np_ * h * h)         # agg@Wl2 + h@Wr2
    bytes_accessed = (x_p.size * 2 + adj_p.size * 2 + inv_p.size * 4
                      + (wl1.size + wr1.size + wl2.size + wr2.size) * 2
                      + (b1.size + b2.size) * 4 + np_ * h * 4)
    return pl.pallas_call(
        fused_graphsage_kernel,
        out_shape=jax.ShapeDtypeStruct((np_, h), jnp.float32),
        in_specs=[_full_spec(a.shape)
                  for a in (x_p, adj_p, inv_p, wl1, wr1, b1, wl2, wr2, b2)],
        out_specs=_full_spec((np_, h)),
        cost_estimate=pl.CostEstimate(flops=flops, transcendentals=0,
                                      bytes_accessed=bytes_accessed),
        compiler_params=pltpu.CompilerParams(vmem_limit_bytes=_VMEM_LIMIT),
    )(x_p, adj_p, inv_p, wl1, wr1, b1, wl2, wr2, b2)


# ------------------ dst-row-tiled layer kernel (large graphs) --------------- #
def sage_layer_kernel(x_ref, adj_ref, invdeg_ref, wl_ref, wr_ref, b_ref, o_ref,
                      *, tm, relu):
    """One SAGEConv(mean) layer for a TM-row tile of destination nodes.

    x_ref   [Np, C]  bf16 (full resident: aggregation source for every tile)
    adj_ref [TM, Np] bf16 raw in-edge counts for this dst-row tile
    invdeg  [TM, 1]  f32
    wl/wr   [C, H]   bf16,  b [1, H] f32
    o_ref   [TM, H]
    """
    agg = jnp.dot(adj_ref[...], x_ref[...],
                  preferred_element_type=jnp.float32) * invdeg_ref[...]
    row0 = pl.multiple_of(pl.program_id(0) * tm, tm)
    x_self = x_ref[pl.ds(row0, tm), :]
    out = (jnp.dot(agg.astype(jnp.bfloat16), wl_ref[...],
                   preferred_element_type=jnp.float32)
           + jnp.dot(x_self, wr_ref[...], preferred_element_type=jnp.float32)
           + b_ref[...])
    if relu:
        out = jnp.maximum(out, 0.0)
    o_ref[...] = out.astype(o_ref.dtype)


def sage_layer_tiled(x_p, adj_p, inv_p, wl, wr, b, *, relu, tm, out_dtype):
    np_, c = x_p.shape
    h = wl.shape[1]
    return pl.pallas_call(
        functools.partial(sage_layer_kernel, tm=tm, relu=relu),
        out_shape=jax.ShapeDtypeStruct((np_, h), out_dtype),
        grid=(np_ // tm,),
        in_specs=[
            pl.BlockSpec((np_, c), lambda i: (0, 0)),    # full x resident
            pl.BlockSpec((tm, np_), lambda i: (i, 0)),   # adj row tile (pipelined)
            pl.BlockSpec((tm, 1), lambda i: (i, 0)),
            pl.BlockSpec((c, h), lambda i: (0, 0)),
            pl.BlockSpec((c, h), lambda i: (0, 0)),
            pl.BlockSpec((1, h), lambda i: (0, 0)),
        ],
        out_specs=pl.BlockSpec((tm, h), lambda i: (i, 0)),
        compiler_params=pltpu.CompilerParams(
            dimension_semantics=("parallel",),   # shard row tiles across TCs (v7x)
            vmem_limit_bytes=_VMEM_LIMIT,
        ),
    )(x_p, adj_p, inv_p, wl, wr, b)


# ------------------------------ JAX glue ----------------------------------- #
def build_count_adjacency(edge_index, num_nodes):
    """adj[dst, src] = edge multiplicity (exact in bf16); inv_deg = 1/max(deg,1)."""
    src, dst = edge_index[0], edge_index[1]
    adj = jnp.zeros((num_nodes, num_nodes), jnp.float32).at[dst, src].add(1.0)
    deg = adj.sum(axis=1, keepdims=True)
    inv_deg = 1.0 / jnp.maximum(deg, 1.0)
    return adj, inv_deg


def _pad2(a, rows, cols):
    return jnp.pad(a, ((0, rows - a.shape[0]), (0, cols - a.shape[1])))


def prepare_weights(params):
    """One-time bf16 cast of the SAGEConv weights (hoisted out of the forward)."""
    def prep(p):
        return {"w_l": p["w_l"].astype(jnp.bfloat16),
                "w_r": p["w_r"].astype(jnp.bfloat16),
                "b": p["b"].astype(jnp.float32)}
    return {"conv1": prep(params["conv1"]), "conv2": prep(params["conv2"])}


@jax.jit
def graphsage_allo_forward(prep, x, edge_index):
    """Equivalent of GraphSAGEWithALLOHeads.forward (eval mode)."""
    n, c_in = x.shape
    hidden = prep["conv1"]["w_l"].shape[1]
    use_tiled = n >= _TILED_MIN_ROWS
    np_ = _round_up(n, _TILE_ROWS) if use_tiled else _round_up(max(n, 16), 16)

    adj, inv_deg = build_count_adjacency(edge_index, n)
    adj_p = _pad2(adj, np_, np_).astype(jnp.bfloat16)
    x_p = _pad2(x, np_, c_in).astype(jnp.bfloat16)
    inv_p = _pad2(inv_deg, np_, 1)

    c1, c2 = prep["conv1"], prep["conv2"]
    if use_tiled:
        # Two row-tiled calls; h takes a tiny bf16 round-trip through HBM but
        # both TensorCores and DMA/MXU pipelining are engaged.
        h = sage_layer_tiled(x_p, adj_p, inv_p, c1["w_l"], c1["w_r"], c1["b"],
                             relu=True, tm=_TILE_ROWS, out_dtype=jnp.bfloat16)
        out_p = sage_layer_tiled(h, adj_p, inv_p, c2["w_l"], c2["w_r"], c2["b"],
                                 relu=False, tm=_TILE_ROWS, out_dtype=jnp.float32)
    else:
        out_p = fused_graphsage(x_p, adj_p, inv_p,
                                c1["w_l"], c1["w_r"], c1["b"],
                                c2["w_l"], c2["w_r"], c2["b"])
    return out_p[:n, :hidden]


def reference_forward(params, x, edge_index):
    """Pure-JAX f32 reference of the same forward pass."""
    n = x.shape[0]
    adj, inv_deg = build_count_adjacency(edge_index, n)
    adj = adj * inv_deg

    def layer(xin, p):
        agg = adj @ xin
        return agg @ p["w_l"] + xin @ p["w_r"] + p["b"]

    h = jnp.maximum(layer(x, params["conv1"]), 0.0)
    return layer(h, params["conv2"])


def init_params(key, in_channels, hidden_channels, emb_dim):
    """Deterministic synthetic parameters matching the module's __init__ shapes."""
    ks = jax.random.split(key, 8)

    def lin(kw, fan_in, fan_out, bias):
        scale = 1.0 / jnp.sqrt(jnp.float32(fan_in))
        w = jax.random.uniform(kw, (fan_in, fan_out), jnp.float32, -scale, scale)
        b = jnp.zeros((1, fan_out), jnp.float32) if bias else None
        return w, b

    w_l1, b1 = lin(ks[0], in_channels, hidden_channels, True)
    w_r1, _ = lin(ks[1], in_channels, hidden_channels, False)
    w_l2, b2 = lin(ks[2], hidden_channels, hidden_channels, True)
    w_r2, _ = lin(ks[3], hidden_channels, hidden_channels, False)

    return {
        "conv1": {"w_l": w_l1, "w_r": w_r1, "b": b1},
        "conv2": {"w_l": w_l2, "w_r": w_r2, "b": b2},
        # ALLO heads exist in the module but are not used by forward(); kept
        # only for shape fidelity.
        "start_head": lin(ks[4], hidden_channels, emb_dim, True),
        "end_head": lin(ks[5], hidden_channels, emb_dim, True),
        "constraint_head1": lin(ks[6], hidden_channels, emb_dim, True),
        "constraint_head2": lin(ks[7], hidden_channels, emb_dim, True),
    }


# ------------------------------- Driver ------------------------------------ #
if __name__ == "__main__":
    key = jax.random.PRNGKey(0)
    k_x, k_e, k_p = jax.random.split(key, 3)

    num_nodes = 64
    in_channels = 16
    hidden_channels = 32
    emb_dim = 32
    num_edges = 128

    x = jax.random.normal(k_x, (num_nodes, in_channels), jnp.float32)
    edge_index = jax.random.randint(k_e, (2, num_edges), 0, num_nodes, jnp.int32)
    params = init_params(k_p, in_channels, hidden_channels, emb_dim)
    prep = prepare_weights(params)   # hoisted bf16 weight prep (done once)

    node_embeddings = jax.block_until_ready(graphsage_allo_forward(prep, x, edge_index))
    ref = reference_forward(params, x, edge_index)

    assert node_embeddings.shape == (num_nodes, hidden_channels)
    assert jnp.all(jnp.isfinite(node_embeddings))
    rel_err = jnp.linalg.norm(node_embeddings - ref) / jnp.maximum(
        jnp.linalg.norm(ref), 1e-6
    )
    assert rel_err < 3e-2, f"relative error too high: {rel_err}"
    print("KERNEL_OK")
</pallas_src>

<mosaic_0001>
module attributes {stable_mosaic.version = 11 : i64} {
  func.func private @main(%arg0: i32) attributes {dimension_semantics = [#tpu.dimension_semantics<core_parallel>], iteration_bounds = array<i64: 2>, tpu.core_type = #tpu.core_type<sc_scalar_subcore>, window_params = []} {
    return
  }
}

module attributes {stable_mosaic.version = 11 : i64} {
  func.func private @main(%arg0: i32) attributes {dimension_semantics = [#tpu.dimension_semantics<core_parallel>], iteration_bounds = array<i64: 2>, tpu.core_type = #tpu.core_type<sc_scalar_subcore>, window_params = []} {
    return
  }
}

module attributes {stable_mosaic.version = 11 : i64} {
  func.func @fused_graphsage_kernel(%arg0: memref<64x16xbf16, #tpu.memory_space<vmem>>, %arg1: memref<64x64xbf16, #tpu.memory_space<vmem>>, %arg2: memref<64x1xf32, #tpu.memory_space<vmem>>, %arg3: memref<16x32xbf16, #tpu.memory_space<vmem>>, %arg4: memref<16x32xbf16, #tpu.memory_space<vmem>>, %arg5: memref<1x32xf32, #tpu.memory_space<vmem>>, %arg6: memref<32x32xbf16, #tpu.memory_space<vmem>>, %arg7: memref<32x32xbf16, #tpu.memory_space<vmem>>, %arg8: memref<1x32xf32, #tpu.memory_space<vmem>>, %arg9: memref<64x32xf32, #tpu.memory_space<vmem>>) attributes {dimension_semantics = [], scalar_prefetch = 0 : i64, scratch_operands = 0 : i64, tpu.core_type = #tpu.core_type<tc>} {
    %c0 = arith.constant 0 : index
    %c0_0 = arith.constant 0 : index
    %0 = vector.load %arg0[%c0, %c0_0] : memref<64x16xbf16, #tpu.memory_space<vmem>>, vector<64x16xbf16>
    %c0_1 = arith.constant 0 : index
    %c0_2 = arith.constant 0 : index
    %1 = vector.load %arg1[%c0_1, %c0_2] : memref<64x64xbf16, #tpu.memory_space<vmem>>, vector<64x64xbf16>
    %c0_3 = arith.constant 0 : index
    %c0_4 = arith.constant 0 : index
    %2 = vector.load %arg2[%c0_3, %c0_4] : memref<64x1xf32, #tpu.memory_space<vmem>>, vector<64x1xf32>
    %cst = arith.constant dense<0.000000e+00> : vector<64x16xf32>
    %3 = tpu.matmul %1, %0, %cst {dimension_numbers = #tpu.dot_dimension_numbers<[1], [0], [0], [1], [0, 0, 1, 1], [], []>} : vector<64x64xbf16>, vector<64x16xbf16>, vector<64x16xf32> -> vector<64x16xf32>
    %4 = vector.broadcast %2 : vector<64x1xf32> to vector<64x16xf32>
    %5 = arith.mulf %3, %4 : vector<64x16xf32>
    %6 = arith.truncf %5 : vector<64x16xf32> to vector<64x16xbf16>
    %c0_5 = arith.constant 0 : index
    %c0_6 = arith.constant 0 : index
    %7 = vector.load %arg3[%c0_5, %c0_6] : memref<16x32xbf16, #tpu.memory_space<vmem>>, vector<16x32xbf16>
    %cst_7 = arith.constant dense<0.000000e+00> : vector<64x32xf32>
    %8 = tpu.matmul %6, %7, %cst_7 {dimension_numbers = #tpu.dot_dimension_numbers<[1], [0], [0], [1], [0, 0, 1, 1], [], []>} : vector<64x16xbf16>, vector<16x32xbf16>, vector<64x32xf32> -> vector<64x32xf32>
    %c0_8 = arith.constant 0 : index
    %c0_9 = arith.constant 0 : index
    %9 = vector.load %arg4[%c0_8, %c0_9] : memref<16x32xbf16, #tpu.memory_space<vmem>>, vector<16x32xbf16>
    %cst_10 = arith.constant dense<0.000000e+00> : vector<64x32xf32>
    %10 = tpu.matmul %0, %9, %cst_10 {dimension_numbers = #tpu.dot_dimension_numbers<[1], [0], [0], [1], [0, 0, 1, 1], [], []>} : vector<64x16xbf16>, vector<16x32xbf16>, vector<64x32xf32> -> vector<64x32xf32>
    %11 = arith.addf %8, %10 : vector<64x32xf32>
    %c0_11 = arith.constant 0 : index
    %c0_12 = arith.constant 0 : index
    %12 = vector.load %arg5[%c0_11, %c0_12] : memref<1x32xf32, #tpu.memory_space<vmem>>, vector<1x32xf32>
    %13 = vector.broadcast %12 : vector<1x32xf32> to vector<64x32xf32>
    %14 = arith.addf %11, %13 : vector<64x32xf32>
    %cst_13 = arith.constant 0.000000e+00 : f32
    %15 = vector.broadcast %cst_13 : f32 to vector<64x32xf32>
    %16 = arith.maximumf %14, %15 : vector<64x32xf32>
    %17 = arith.truncf %16 : vector<64x32xf32> to vector<64x32xbf16>
    %cst_14 = arith.constant dense<0.000000e+00> : vector<64x32xf32>
    %18 = tpu.matmul %1, %17, %cst_14 {dimension_numbers = #tpu.dot_dimension_numbers<[1], [0], [0], [1], [0, 0, 1, 1], [], []>} : vector<64x64xbf16>, vector<64x32xbf16>, vector<64x32xf32> -> vector<64x32xf32>
    %19 = vector.broadcast %2 : vector<64x1xf32> to vector<64x32xf32>
    %20 = arith.mulf %18, %19 : vector<64x32xf32>
    %21 = arith.truncf %20 : vector<64x32xf32> to vector<64x32xbf16>
    %c0_15 = arith.constant 0 : index
    %c0_16 = arith.constant 0 : index
    %22 = vector.load %arg6[%c0_15, %c0_16] : memref<32x32xbf16, #tpu.memory_space<vmem>>, vector<32x32xbf16>
    %cst_17 = arith.constant dense<0.000000e+00> : vector<64x32xf32>
    %23 = tpu.matmul %21, %22, %cst_17 {dimension_numbers = #tpu.dot_dimension_numbers<[1], [0], [0], [1], [0, 0, 1, 1], [], []>} : vector<64x32xbf16>, vector<32x32xbf16>, vector<64x32xf32> -> vector<64x32xf32>
    %c0_18 = arith.constant 0 : index
    %c0_19 = arith.constant 0 : index
    %24 = vector.load %arg7[%c0_18, %c0_19] : memref<32x32xbf16, #tpu.memory_space<vmem>>, vector<32x32xbf16>
    %cst_20 = arith.constant dense<0.000000e+00> : vector<64x32xf32>
    %25 = tpu.matmul %17, %24, %cst_20 {dimension_numbers = #tpu.dot_dimension_numbers<[1], [0], [0], [1], [0, 0, 1, 1], [], []>} : vector<64x32xbf16>, vector<32x32xbf16>, vector<64x32xf32> -> vector<64x32xf32>
    %26 = arith.addf %23, %25 : vector<64x32xf32>
    %c0_21 = arith.constant 0 : index
    %c0_22 = arith.constant 0 : index
    %27 = vector.load %arg8[%c0_21, %c0_22] : memref<1x32xf32, #tpu.memory_space<vmem>>, vector<1x32xf32>
    %28 = vector.broadcast %27 : vector<1x32xf32> to vector<64x32xf32>
    %29 = arith.addf %26, %28 : vector<64x32xf32>
    %c0_23 = arith.constant 0 : index
    %c0_24 = arith.constant 0 : index
    %30 = vector.load %arg9[%c0_23, %c0_24] : memref<64x32xf32, #tpu.memory_space<vmem>>, vector<64x32xf32>
    tpu.vector_store %arg9[%c0_23, %c0_24], %29 {strides = array<i32>} : memref<64x32xf32, #tpu.memory_space<vmem>>, vector<64x32xf32>,
    return
  }
}

</mosaic_0001>

<llo_original>
// kernel: graphsage_allo_forward.1
$region0: #{graphsage_allo_forward.1}
  #allocation0 [shape = 'u32[]', space=smem, size = 0x4, offset = 0x4, fixed_abs, tag = 'smem constant byte address 0x4 - core index']
  #allocation1 [shape = 'u32[144,128]{1,0:T(1,128)}', space=vmem, size = 0x12000, scoped, tag = 'internal scratch']
  %s0 = inlined_call_operand.vmem [shape: bf16[64,16], index: 0, kind: input, shape index: {}]
  %s1 = inlined_call_operand.vmem [shape: bf16[64,64], index: 1, kind: input, shape index: {}]
  %s2 = inlined_call_operand.vmem [shape: f32[64,1], index: 2, kind: input, shape index: {}]
  %s3 = inlined_call_operand.vmem [shape: bf16[16,32], index: 3, kind: input, shape index: {}]
  %s4 = inlined_call_operand.vmem [shape: bf16[16,32], index: 4, kind: input, shape index: {}]
  %s5 = inlined_call_operand.vmem [shape: f32[1,32], index: 5, kind: input, shape index: {}]
  %s6 = inlined_call_operand.vmem [shape: bf16[32,32], index: 6, kind: input, shape index: {}]
  %s7 = inlined_call_operand.vmem [shape: bf16[32,32], index: 7, kind: input, shape index: {}]
  %s8 = inlined_call_operand.vmem [shape: f32[1,32], index: 8, kind: input, shape index: {}]
  %s9 = inlined_call_operand.vmem [shape: f32[64,32], index: 9, kind: output, shape index: {}]
  %s10 = sld [smem:[#allocation0]]
  $region46: #{graphsage_allo_forward.1} parent=0
    _
  %s12 = ssub.s32 1, %s10
  %s13 = scalar_select 0, %s12, %s10
  // Predicated region
  $region2: #{graphsage_allo_forward.1} parent=0 // pred_check
    _
  $region3: #{graphsage_allo_forward.1} parent=0 // pred_check_branch
    %15 = sbr.rel (0) target = $region5
  $region4: #{graphsage_allo_forward.1} parent=0 // pred_region
    _
  $region5: #{graphsage_allo_forward.1} parent=0 // pred_fallthru
    _
  // Predicated region
  $region6: #{graphsage_allo_forward.1} parent=0 // pred_check
    _
  $region7: #{graphsage_allo_forward.1} parent=0 // pred_check_branch
    %17 = sbr.rel (0) target = $region9
  $region8: #{graphsage_allo_forward.1} parent=0 // pred_region
    _
  $region9: #{graphsage_allo_forward.1} parent=0 // pred_fallthru
    _
  // Predicated region
  $region10: #{graphsage_allo_forward.1} parent=0 // pred_check
    _
  $region11: #{graphsage_allo_forward.1} parent=0 // pred_check_branch
    %19 = sbr.rel (0) target = $region13
  $region12: #{graphsage_allo_forward.1} parent=0 // pred_region
    _
  $region13: #{graphsage_allo_forward.1} parent=0 // pred_fallthru
    _
  // Predicated region
  $region14: #{graphsage_allo_forward.1} parent=0 // pred_check
    _
  $region15: #{graphsage_allo_forward.1} parent=0 // pred_check_branch
    %21 = sbr.rel (0) target = $region17
  $region16: #{graphsage_allo_forward.1} parent=0 // pred_region
    _
  $region17: #{graphsage_allo_forward.1} parent=0 // pred_fallthru
    _
  // Predicated region
  $region18: #{graphsage_allo_forward.1} parent=0 // pred_check
    _
  $region19: #{graphsage_allo_forward.1} parent=0 // pred_check_branch
    %23 = sbr.rel (0) target = $region21
  $region20: #{graphsage_allo_forward.1} parent=0 // pred_region
    _
  $region21: #{graphsage_allo_forward.1} parent=0 // pred_fallthru
    _
  // Predicated region
  $region22: #{graphsage_allo_forward.1} parent=0 // pred_check
    _
  $region23: #{graphsage_allo_forward.1} parent=0 // pred_check_branch
    %25 = sbr.rel (0) target = $region25
  $region24: #{graphsage_allo_forward.1} parent=0 // pred_region
    _
  $region25: #{graphsage_allo_forward.1} parent=0 // pred_fallthru
    _
  // Predicated region
  $region26: #{graphsage_allo_forward.1} parent=0 // pred_check
    _
  $region27: #{graphsage_allo_forward.1} parent=0 // pred_check_branch
    %27 = sbr.rel (0) target = $region29
  $region28: #{graphsage_allo_forward.1} parent=0 // pred_region
    _
  $region29: #{graphsage_allo_forward.1} parent=0 // pred_fallthru
    _
  // Predicated region
  $region30: #{graphsage_allo_forward.1} parent=0 // pred_check
    _
  $region31: #{graphsage_allo_forward.1} parent=0 // pred_check_branch
    %29 = sbr.rel (0) target = $region33
  $region32: #{graphsage_allo_forward.1} parent=0 // pred_region
    _
  $region33: #{graphsage_allo_forward.1} parent=0 // pred_fallthru
    _
  // Predicated region
  $region34: #{graphsage_allo_forward.1} parent=0 // pred_check
    _
  $region35: #{graphsage_allo_forward.1} parent=0 // pred_check_branch
    %31 = sbr.rel (0) target = $region37
  $region36: #{graphsage_allo_forward.1} parent=0 // pred_region
    _
  $region37: #{graphsage_allo_forward.1} parent=0 // pred_fallthru
    _
  %v33 = vld [vmem:[%s0] sm:$0xf]
  %v34 = vld [vmem:[%s0 + $0x4] sm:$0xf]
  %v35 = vld [vmem:[%s0 + $0x8] sm:$0xf]
  %v36 = vld [vmem:[%s0 + $0xc] sm:$0xf]
  %v37 = vld [vmem:[%s0 + $0x10] sm:$0xf]
  %v38 = vld [vmem:[%s0 + $0x14] sm:$0xf]
  %v39 = vld [vmem:[%s0 + $0x18] sm:$0xf]
  %v40 = vld [vmem:[%s0 + $0x1c] sm:$0xf]
  %v41 = vld [vmem:[%s1] sm:$0xf]
  %v42 = vld [vmem:[%s1 + $0x4] sm:$0xf]
  %v43 = vld [vmem:[%s1 + $0x8] sm:$0xf]
  %v44 = vld [vmem:[%s1 + $0xc] sm:$0xf]
  %v45 = vld [vmem:[%s1 + $0x10] sm:$0xf]
  %v46 = vld [vmem:[%s1 + $0x14] sm:$0xf]
  %v47 = vld [vmem:[%s1 + $0x18] sm:$0xf]
  %v48 = vld [vmem:[%s1 + $0x1c] sm:$0xf]
  %v49 = vld [vmem:[%s2] sm:$0xff]
  %v50 = vld [vmem:[%s2 + $0x8] sm:$0xff]
  %v51 = vld [vmem:[%s2 + $0x10] sm:$0xff]
  %v52 = vld [vmem:[%s2 + $0x18] sm:$0xff]
  %v53 = vld [vmem:[%s2 + $0x20] sm:$0xff]
  %v54 = vld [vmem:[%s2 + $0x28] sm:$0xff]
  %v55 = vld [vmem:[%s2 + $0x30] sm:$0xff]
  %v56 = vld [vmem:[%s2 + $0x38] sm:$0xff]
  %v65 = vunpack.c.l.b16 %v41
  %v66 = vunpack.c.l.b16 %v42
  %v67 = vunpack.c.l.b16 %v43
  %v68 = vunpack.c.l.b16 %v44
  %v69 = vunpack.c.l.b16 %v45
  %v70 = vunpack.c.l.b16 %v46
  %v71 = vunpack.c.l.b16 %v47
  %v72 = vunpack.c.l.b16 %v48
  %v73 = vpack.c.b16 %v66, %v65
  %v74 = vpack.c.b16 %v68, %v67
  %v75 = vpack.c.b16 %v70, %v69
  %v76 = vpack.c.b16 %v72, %v71
  %v85 = vunpack.c.l.b16 %v33
  %v86 = vunpack.c.l.b16 %v34
  %v87 = vunpack.c.l.b16 %v35
  %v88 = vunpack.c.l.b16 %v36
  %v89 = vunpack.c.l.b16 %v37
  %v90 = vunpack.c.l.b16 %v38
  %v91 = vunpack.c.l.b16 %v39
  %v92 = vunpack.c.l.b16 %v40
  %v93 = vpack.c.b16 %v86, %v85
  %v94 = vpack.c.b16 %v88, %v87
  %v95 = vpack.c.b16 %v90, %v89
  %v96 = vpack.c.b16 %v92, %v91
  %vm101 = vcmask 523264
  %v103 = vsel %vm101, %v73, 0
  %v106 = vsel %vm101, %v74, 0
  %v109 = vsel %vm101, %v75, 0
  %v112 = vsel %vm101, %v76, 0
  %114 = vmatprep.subr.bf16.mxu0 0
  %115 = vmatpush1.bf16.msra.mxu0 0
  %116 = vmatprep.subr.bf16.mxu0 0
  %117 = vmatpush1.bf16.msra.mxu0 0
  %118 = vmatprep.subr.bf16.mxu0 0
  %119 = vmatpush1.bf16.msra.mxu0 0
  %120 = vmatprep.subr.bf16.mxu0 0
  %121 = vmatpush1.bf16.msra.mxu0 0
  %122 = vmatprep.subr.bf16.mxu0 0
  %123 = vmatpush1.bf16.msra.mxu0 %v96
  %124 = vmatprep.subr.bf16.mxu0 0
  %125 = vmatpush1.bf16.msra.mxu0 %v95
  %126 = vmatprep.subr.bf16.mxu0 0
  %127 = vmatpush1.bf16.msra.mxu0 %v94
  %128 = vmatprep.subr.bf16.mxu0 0
  %129 = vmatpush1.bf16.msra.mxu0 %v93
  %130 = vmatprep.subr.bf16.mxu0 0
  %131 = vmatpush2.bf16.msra.mxu0 0
  %132 = vmatprep.subr.bf16.mxu0 0
  %133 = vmatpush2.bf16.msra.mxu0 0
  %134 = vmatprep.subr.bf16.mxu0 0
  %135 = vmatpush2.bf16.msra.mxu0 0
  %136 = vmatprep.subr.bf16.mxu0 0
  %137 = vmatpush2.bf16.msra.mxu0 0
  %138 = vmatprep.subr.bf16.mxu0 0
  %139 = vmatpush2.bf16.msra.mxu0 0
  %140 = vmatprep.subr.bf16.mxu0 0
  %141 = vmatpush2.bf16.msra.mxu0 0
  %142 = vmatprep.subr.bf16.mxu0 0
  %143 = vmatpush2.bf16.msra.mxu0 0
  %144 = vmatprep.subr.bf16.mxu0 0
  %145 = vmatpush2.bf16.msra.mxu0 0
  %146 = vmatprep.mubr.bf16.mxu0 0
  %147 = vmatmul.mubr.bf16.gmra.mxu0 %v103
  %v148 = vpop.f32.mrf.mxu0
  %v149 = vadd.f32 0.0, %v148
  %v150 = vpop.f32.mrf.mxu0
  %v151 = vpop.f32.mrf.mxu0
  %v152 = vadd.f32 0.0, %v151
  %v153 = vpop.f32.mrf.mxu0
  %154 = vmatprep.mubr.bf16.mxu0 0
  %155 = vmatmul.mubr.bf16.gmra.mxu0 %v106
  %v156 = vpop.f32.mrf.mxu0
  %v157 = vadd.f32 0.0, %v156
  %v158 = vpop.f32.mrf.mxu0
  %v159 = vpop.f32.mrf.mxu0
  %v160 = vadd.f32 0.0, %v159
  %v161 = vpop.f32.mrf.mxu0
  %162 = vmatprep.mubr.bf16.mxu0 0
  %163 = vmatmul.mubr.bf16.gmra.mxu0 %v109
  %v164 = vpop.f32.mrf.mxu0
  %v165 = vadd.f32 0.0, %v164
  %v166 = vpop.f32.mrf.mxu0
  %v167 = vpop.f32.mrf.mxu0
  %v168 = vadd.f32 0.0, %v167
  %v169 = vpop.f32.mrf.mxu0
  %170 = vmatprep.mubr.bf16.mxu0 0
  %171 = vmatmul.mubr.bf16.gmra.mxu0 %v112
  %v172 = vpop.f32.mrf.mxu0
  %v173 = vadd.f32 0.0, %v172
  %v174 = vpop.f32.mrf.mxu0
  %v175 = vpop.f32.mrf.mxu0
  %v176 = vadd.f32 0.0, %v175
  %v177 = vpop.f32.mrf.mxu0
  %178 = vdwg.mxu0
  %180 = vset.pattern.permute.xlu0 0
  %181 = vperm.xlu0 %180, %v49
  %v182 = vpop.permute.xlu0 %181
  %185 = vset.pattern.permute.xlu0 0
  %186 = vperm.xlu0 %185, %v50
  %v187 = vpop.permute.xlu0 %186
  %190 = vset.pattern.permute.xlu0 0
  %191 = vperm.xlu0 %190, %v51
  %v192 = vpop.permute.xlu0 %191
  %195 = vset.pattern.permute.xlu0 0
  %196 = vperm.xlu0 %195, %v52
  %v197 = vpop.permute.xlu0 %196
  %200 = vset.pattern.permute.xlu0 0
  %201 = vperm.xlu0 %200, %v53
  %v202 = vpop.permute.xlu0 %201
  %205 = vset.pattern.permute.xlu0 0
  %206 = vperm.xlu0 %205, %v54
  %v207 = vpop.permute.xlu0 %206
  %210 = vset.pattern.permute.xlu0 0
  %211 = vperm.xlu0 %210, %v55
  %v212 = vpop.permute.xlu0 %211
  %215 = vset.pattern.permute.xlu0 0
  %216 = vperm.xlu0 %215, %v56
  %v217 = vpop.permute.xlu0 %216
  %v219 = vmul.f32 %v149, %v182
  %v220 = vmul.f32 %v152, %v187
  %v221 = vmul.f32 %v157, %v192
  %v222 = vmul.f32 %v160, %v197
  %v223 = vmul.f32 %v165, %v202
  %v224 = vmul.f32 %v168, %v207
  %v225 = vmul.f32 %v173, %v212
  %v226 = vmul.f32 %v176, %v217
  %v227 = vpack.c.bf16 %v220, %v219
  %v228 = vpack.c.bf16 %v222, %v221
  %v229 = vpack.c.bf16 %v224, %v223
  %v230 = vpack.c.bf16 %v226, %v225
  %v231 = vld [vmem:[%s3] sm:$0xf]
  %v232 = vld [vmem:[%s3 + $0x4] sm:$0xf]
  %v233 = vld [vmem:[%s4] sm:$0xf]
  %v234 = vld [vmem:[%s4 + $0x4] sm:$0xf]
  %v237 = vunpack.c.l.b16 %v233
  %v238 = vunpack.c.l.b16 %v234
  %v239 = vpack.c.b16 %v238, %v237
  %vm241 = vcmask 130048
  %v243 = vsel %vm241, %v93, 0
  %v246 = vsel %vm241, %v94, 0
  %v249 = vsel %vm241, %v95, 0
  %v252 = vsel %vm241, %v96, 0
  %254 = vmatprep.subr.bf16.mxu0 0
  %255 = vmatpush1.bf16.msra.mxu0 0
  %256 = vmatprep.subr.bf16.mxu0 0
  %257 = vmatpush1.bf16.msra.mxu0 0
  %258 = vmatprep.subr.bf16.mxu0 0
  %259 = vmatpush1.bf16.msra.mxu0 0
  %260 = vmatprep.subr.bf16.mxu0 0
  %261 = vmatpush1.bf16.msra.mxu0 0
  %262 = vmatprep.subr.bf16.mxu0 0
  %263 = vmatpush1.bf16.msra.mxu0 0
  %264 = vmatprep.subr.bf16.mxu0 0
  %265 = vmatpush1.bf16.msra.mxu0 0
  %266 = vmatprep.subr.bf16.mxu0 0
  %267 = vmatpush1.bf16.msra.mxu0 0
  %268 = vmatprep.subr.bf16.mxu0 0
  %269 = vmatpush1.bf16.msra.mxu0 %v239
  %270 = vmatprep.subr.bf16.mxu0 0
  %271 = vmatpush2.bf16.msra.mxu0 0
  %272 = vmatprep.subr.bf16.mxu0 0
  %273 = vmatpush2.bf16.msra.mxu0 0
  %274 = vmatprep.subr.bf16.mxu0 0
  %275 = vmatpush2.bf16.msra.mxu0 0
  %276 = vmatprep.subr.bf16.mxu0 0
  %277 = vmatpush2.bf16.msra.mxu0 0
  %278 = vmatprep.subr.bf16.mxu0 0
  %279 = vmatpush2.bf16.msra.mxu0 0
  %280 = vmatprep.subr.bf16.mxu0 0
  %281 = vmatpush2.bf16.msra.mxu0 0
  %282 = vmatprep.subr.bf16.mxu0 0
  %283 = vmatpush2.bf16.msra.mxu0 0
  %284 = vmatprep.subr.bf16.mxu0 0
  %285 = vmatpush2.bf16.msra.mxu0 0
  %286 = vmatprep.mubr.bf16.mxu0 0
  %287 = vmatmul.mubr.bf16.gmra.mxu0 %v243
  %v288 = vpop.f32.mrf.mxu0
  %v289 = vadd.f32 0.0, %v288
  %v290 = vpop.f32.mrf.mxu0
  %v291 = vpop.f32.mrf.mxu0
  %v292 = vadd.f32 0.0, %v291
  %v293 = vpop.f32.mrf.mxu0
  %294 = vmatprep.mubr.bf16.mxu0 0
  %295 = vmatmul.mubr.bf16.gmra.mxu0 %v246
  %v296 = vpop.f32.mrf.mxu0
  %v297 = vadd.f32 0.0, %v296
  %v298 = vpop.f32.mrf.mxu0
  %v299 = vpop.f32.mrf.mxu0
  %v300 = vadd.f32 0.0, %v299
  %v301 = vpop.f32.mrf.mxu0
  %302 = vmatprep.mubr.bf16.mxu0 0
  %303 = vmatmul.mubr.bf16.gmra.mxu0 %v249
  %v304 = vpop.f32.mrf.mxu0
  %v305 = vadd.f32 0.0, %v304
  %v306 = vpop.f32.mrf.mxu0
  %v307 = vpop.f32.mrf.mxu0
  %v308 = vadd.f32 0.0, %v307
  %v309 = vpop.f32.mrf.mxu0
  %310 = vmatprep.mubr.bf16.mxu0 0
  %311 = vmatmul.mubr.bf16.gmra.mxu0 %v252
  %v312 = vpop.f32.mrf.mxu0
  %v313 = vadd.f32 0.0, %v312
  %v314 = vpop.f32.mrf.mxu0
  %v315 = vpop.f32.mrf.mxu0
  %v316 = vadd.f32 0.0, %v315
  %v317 = vpop.f32.mrf.mxu0
  %318 = vdwg.mxu0
  %v321 = vunpack.c.l.b16 %v231
  %v322 = vunpack.c.l.b16 %v232
  %v323 = vpack.c.b16 %v322, %v321
  %v326 = vsel %vm241, %v227, 0
  %v329 = vsel %vm241, %v228, 0
  %v332 = vsel %vm241, %v229, 0
  %v335 = vsel %vm241, %v230, 0
  %337 = vmatprep.subr.bf16.mxu0 0
  %338 = vmatpush1.bf16.msra.mxu0 0
  %339 = vmatprep.subr.bf16.mxu0 0
  %340 = vmatpush1.bf16.msra.mxu0 0
  %341 = vmatprep.subr.bf16.mxu0 0
  %342 = vmatpush1.bf16.msra.mxu0 0
  %343 = vmatprep.subr.bf16.mxu0 0
  %344 = vmatpush1.bf16.msra.mxu0 0
  %345 = vmatprep.subr.bf16.mxu0 0
  %346 = vmatpush1.bf16.msra.mxu0 0
  %347 = vmatprep.subr.bf16.mxu0 0
  %348 = vmatpush1.bf16.msra.mxu0 0
  %349 = vmatprep.subr.bf16.mxu0 0
  %350 = vmatpush1.bf16.msra.mxu0 0
  %351 = vmatprep.subr.bf16.mxu0 0
  %352 = vmatpush1.bf16.msra.mxu0 %v323
  %353 = vmatprep.subr.bf16.mxu0 0
  %354 = vmatpush2.bf16.msra.mxu0 0
  %355 = vmatprep.subr.bf16.mxu0 0
  %356 = vmatpush2.bf16.msra.mxu0 0
  %357 = vmatprep.subr.bf16.mxu0 0
  %358 = vmatpush2.bf16.msra.mxu0 0
  %359 = vmatprep.subr.bf16.mxu0 0
  %360 = vmatpush2.bf16.msra.mxu0 0
  %361 = vmatprep.subr.bf16.mxu0 0
  %362 = vmatpush2.bf16.msra.mxu0 0
  %363 = vmatprep.subr.bf16.mxu0 0
  %364 = vmatpush2.bf16.msra.mxu0 0
  %365 = vmatprep.subr.bf16.mxu0 0
  %366 = vmatpush2.bf16.msra.mxu0 0
  %367 = vmatprep.subr.bf16.mxu0 0
  %368 = vmatpush2.bf16.msra.mxu0 0
  %369 = vmatprep.mubr.bf16.mxu0 0
  %370 = vmatmul.mubr.bf16.gmra.mxu0 %v326
  %v371 = vpop.f32.mrf.mxu0
  %v372 = vadd.f32 %v289, %v371
  %v373 = vpop.f32.mrf.mxu0
  %v374 = vpop.f32.mrf.mxu0
  %v375 = vadd.f32 %v292, %v374
  %v376 = vpop.f32.mrf.mxu0
  %377 = vmatprep.mubr.bf16.mxu0 0
  %378 = vmatmul.mubr.bf16.gmra.mxu0 %v329
  %v379 = vpop.f32.mrf.mxu0
  %v380 = vadd.f32 %v297, %v379
  %v381 = vpop.f32.mrf.mxu0
  %v382 = vpop.f32.mrf.mxu0
  %v383 = vadd.f32 %v300, %v382
  %v384 = vpop.f32.mrf.mxu0
  %385 = vmatprep.mubr.bf16.mxu0 0
  %386 = vmatmul.mubr.bf16.gmra.mxu0 %v332
  %v387 = vpop.f32.mrf.mxu0
  %v388 = vadd.f32 %v305, %v387
  %v389 = vpop.f32.mrf.mxu0
  %v390 = vpop.f32.mrf.mxu0
  %v391 = vadd.f32 %v308, %v390
  %v392 = vpop.f32.mrf.mxu0
  %393 = vmatprep.mubr.bf16.mxu0 0
  %394 = vmatmul.mubr.bf16.gmra.mxu0 %v335
  %v395 = vpop.f32.mrf.mxu0
  %v396 = vadd.f32 %v313, %v395
  %v397 = vpop.f32.mrf.mxu0
  %v398 = vpop.f32.mrf.mxu0
  %v399 = vadd.f32 %v316, %v398
  %v400 = vpop.f32.mrf.mxu0
  %401 = vdwg.mxu0
  %v402 = vld [vmem:[%s5] sm:$0x1]
  %v404 = vlaneseq
  %v405 = vshrl.u32 %v404, 7
  %v406 = vsub.s32 0, %v405
  %v407 = vrot.slane %v402, %v406
  %v409 = vadd.f32 %v372, %v407
  %v410 = vadd.f32 %v375, %v407
  %v411 = vadd.f32 %v380, %v407
  %v412 = vadd.f32 %v383, %v407
  %v413 = vadd.f32 %v388, %v407
  %v414 = vadd.f32 %v391, %v407
  %v415 = vadd.f32 %v396, %v407
  %v416 = vadd.f32 %v399, %v407
  %v417 = vmax.f32 %v409, 0.0
  %v418 = vmax.f32 %v410, 0.0
  %v419 = vmax.f32 %v411, 0.0
  %v420 = vmax.f32 %v412, 0.0
  %v421 = vmax.f32 %v413, 0.0
  %v422 = vmax.f32 %v414, 0.0
  %v423 = vmax.f32 %v415, 0.0
  %v424 = vmax.f32 %v416, 0.0
  %v425 = vpack.c.bf16 %v418, %v417
  %v426 = vpack.c.bf16 %v420, %v419
  %v427 = vpack.c.bf16 %v422, %v421
  %v428 = vpack.c.bf16 %v424, %v423
  %429 = vmatprep.subr.bf16.mxu0 0
  %430 = vmatpush1.bf16.msra.mxu0 0
  %431 = vmatprep.subr.bf16.mxu0 0
  %432 = vmatpush1.bf16.msra.mxu0 0
  %433 = vmatprep.subr.bf16.mxu0 0
  %434 = vmatpush1.bf16.msra.mxu0 0
  %435 = vmatprep.subr.bf16.mxu0 0
  %436 = vmatpush1.bf16.msra.mxu0 0
  %437 = vmatprep.subr.bf16.mxu0 0
  %438 = vmatpush1.bf16.msra.mxu0 %v428
  %439 = vmatprep.subr.bf16.mxu0 0
  %440 = vmatpush1.bf16.msra.mxu0 %v427
  %441 = vmatprep.subr.bf16.mxu0 0
  %442 = vmatpush1.bf16.msra.mxu0 %v426
  %443 = vmatprep.subr.bf16.mxu0 0
  %444 = vmatpush1.bf16.msra.mxu0 %v425
  %445 = vmatprep.subr.bf16.mxu0 0
  %446 = vmatpush2.bf16.msra.mxu0 0
  %447 = vmatprep.subr.bf16.mxu0 0
  %448 = vmatpush2.bf16.msra.mxu0 0
  %449 = vmatprep.subr.bf16.mxu0 0
  %450 = vmatpush2.bf16.msra.mxu0 0
  %451 = vmatprep.subr.bf16.mxu0 0
  %452 = vmatpush2.bf16.msra.mxu0 0
  %453 = vmatprep.subr.bf16.mxu0 0
  %454 = vmatpush2.bf16.msra.mxu0 0
  %455 = vmatprep.subr.bf16.mxu0 0
  %456 = vmatpush2.bf16.msra.mxu0 0
  %457 = vmatprep.subr.bf16.mxu0 0
  %458 = vmatpush2.bf16.msra.mxu0 0
  %459 = vmatprep.subr.bf16.mxu0 0
  %460 = vmatpush2.bf16.msra.mxu0 0
  %461 = vmatprep.mubr.bf16.mxu0 0
  %462 = vmatmul.mubr.bf16.gmra.mxu0 %v103
  %v463 = vpop.f32.mrf.mxu0
  %v464 = vadd.f32 0.0, %v463
  %v465 = vpop.f32.mrf.mxu0
  %v466 = vpop.f32.mrf.mxu0
  %v467 = vadd.f32 0.0, %v466
  %v468 = vpop.f32.mrf.mxu0
  %469 = vmatprep.mubr.bf16.mxu0 0
  %470 = vmatmul.mubr.bf16.gmra.mxu0 %v106
  %v471 = vpop.f32.mrf.mxu0
  %v472 = vadd.f32 0.0, %v471
  %v473 = vpop.f32.mrf.mxu0
  %v474 = vpop.f32.mrf.mxu0
  %v475 = vadd.f32 0.0, %v474
  %v476 = vpop.f32.mrf.mxu0
  %477 = vmatprep.mubr.bf16.mxu0 0
  %478 = vmatmul.mubr.bf16.gmra.mxu0 %v109
  %v479 = vpop.f32.mrf.mxu0
  %v480 = vadd.f32 0.0, %v479
  %v481 = vpop.f32.mrf.mxu0
  %v482 = vpop.f32.mrf.mxu0
  %v483 = vadd.f32 0.0, %v482
  %v484 = vpop.f32.mrf.mxu0
  %485 = vmatprep.mubr.bf16.mxu0 0
  %486 = vmatmul.mubr.bf16.gmra.mxu0 %v112
  %v487 = vpop.f32.mrf.mxu0
  %v488 = vadd.f32 0.0, %v487
  %v489 = vpop.f32.mrf.mxu0
  %v490 = vpop.f32.mrf.mxu0
  %v491 = vadd.f32 0.0, %v490
  %v492 = vpop.f32.mrf.mxu0
  %493 = vdwg.mxu0
  %v494 = vmul.f32 %v464, %v182
  %v495 = vmul.f32 %v467, %v187
  %v496 = vmul.f32 %v472, %v192
  %v497 = vmul.f32 %v475, %v197
  %v498 = vmul.f32 %v480, %v202
  %v499 = vmul.f32 %v483, %v207
  %v500 = vmul.f32 %v488, %v212
  %v501 = vmul.f32 %v491, %v217
  %v502 = vpack.c.bf16 %v495, %v494
  %v503 = vpack.c.bf16 %v497, %v496
  %v504 = vpack.c.bf16 %v499, %v498
  %v505 = vpack.c.bf16 %v501, %v500
  %v506 = vld [vmem:[%s6] sm:$0xf]
  %v507 = vld [vmem:[%s6 + $0x4] sm:$0xf]
  %v508 = vld [vmem:[%s6 + $0x8] sm:$0xf]
  %v509 = vld [vmem:[%s6 + $0xc] sm:$0xf]
  %v510 = vld [vmem:[%s7] sm:$0xf]
  %v511 = vld [vmem:[%s7 + $0x4] sm:$0xf]
  %v512 = vld [vmem:[%s7 + $0x8] sm:$0xf]
  %v513 = vld [vmem:[%s7 + $0xc] sm:$0xf]
  %v518 = vunpack.c.l.b16 %v510
  %v519 = vunpack.c.l.b16 %v511
  %v520 = vunpack.c.l.b16 %v512
  %v521 = vunpack.c.l.b16 %v513
  %v522 = vpack.c.b16 %v519, %v518
  %v523 = vpack.c.b16 %v521, %v520
  %vm526 = vcmask 261120
  %v528 = vsel %vm526, %v425, 0
  %v531 = vsel %vm526, %v426, 0
  %v534 = vsel %vm526, %v427, 0
  %v537 = vsel %vm526, %v428, 0
  %539 = vmatprep.subr.bf16.mxu0 0
  %540 = vmatpush1.bf16.msra.mxu0 0
  %541 = vmatprep.subr.bf16.mxu0 0
  %542 = vmatpush1.bf16.msra.mxu0 0
  %543 = vmatprep.subr.bf16.mxu0 0
  %544 = vmatpush1.bf16.msra.mxu0 0
  %545 = vmatprep.subr.bf16.mxu0 0
  %546 = vmatpush1.bf16.msra.mxu0 0
  %547 = vmatprep.subr.bf16.mxu0 0
  %548 = vmatpush1.bf16.msra.mxu0 0
  %549 = vmatprep.subr.bf16.mxu0 0
  %550 = vmatpush1.bf16.msra.mxu0 0
  %551 = vmatprep.subr.bf16.mxu0 0
  %552 = vmatpush1.bf16.msra.mxu0 %v523
  %553 = vmatprep.subr.bf16.mxu0 0
  %554 = vmatpush1.bf16.msra.mxu0 %v522
  %555 = vmatprep.subr.bf16.mxu0 0
  %556 = vmatpush2.bf16.msra.mxu0 0
  %557 = vmatprep.subr.bf16.mxu0 0
  %558 = vmatpush2.bf16.msra.mxu0 0
  %559 = vmatprep.subr.bf16.mxu0 0
  %560 = vmatpush2.bf16.msra.mxu0 0
  %561 = vmatprep.subr.bf16.mxu0 0
  %562 = vmatpush2.bf16.msra.mxu0 0
  %563 = vmatprep.subr.bf16.mxu0 0
  %564 = vmatpush2.bf16.msra.mxu0 0
  %565 = vmatprep.subr.bf16.mxu0 0
  %566 = vmatpush2.bf16.msra.mxu0 0
  %567 = vmatprep.subr.bf16.mxu0 0
  %568 = vmatpush2.bf16.msra.mxu0 0
  %569 = vmatprep.subr.bf16.mxu0 0
  %570 = vmatpush2.bf16.msra.mxu0 0
  %571 = vmatprep.mubr.bf16.mxu0 0
  %572 = vmatmul.mubr.bf16.gmra.mxu0 %v528
  %v573 = vpop.f32.mrf.mxu0
  %v574 = vadd.f32 0.0, %v573
  %v575 = vpop.f32.mrf.mxu0
  %v576 = vpop.f32.mrf.mxu0
  %v577 = vadd.f32 0.0, %v576
  %v578 = vpop.f32.mrf.mxu0
  %579 = vmatprep.mubr.bf16.mxu0 0
  %580 = vmatmul.mubr.bf16.gmra.mxu0 %v531
  %v581 = vpop.f32.mrf.mxu0
  %v582 = vadd.f32 0.0, %v581
  %v583 = vpop.f32.mrf.mxu0
  %v584 = vpop.f32.mrf.mxu0
  %v585 = vadd.f32 0.0, %v584
  %v586 = vpop.f32.mrf.mxu0
  %587 = vmatprep.mubr.bf16.mxu0 0
  %588 = vmatmul.mubr.bf16.gmra.mxu0 %v534
  %v589 = vpop.f32.mrf.mxu0
  %v590 = vadd.f32 0.0, %v589
  %v591 = vpop.f32.mrf.mxu0
  %v592 = vpop.f32.mrf.mxu0
  %v593 = vadd.f32 0.0, %v592
  %v594 = vpop.f32.mrf.mxu0
  %595 = vmatprep.mubr.bf16.mxu0 0
  %596 = vmatmul.mubr.bf16.gmra.mxu0 %v537
  %v597 = vpop.f32.mrf.mxu0
  %v598 = vadd.f32 0.0, %v597
  %v599 = vpop.f32.mrf.mxu0
  %v600 = vpop.f32.mrf.mxu0
  %v601 = vadd.f32 0.0, %v600
  %v602 = vpop.f32.mrf.mxu0
  %603 = vdwg.mxu0
  %v608 = vunpack.c.l.b16 %v506
  %v609 = vunpack.c.l.b16 %v507
  %v610 = vunpack.c.l.b16 %v508
  %v611 = vunpack.c.l.b16 %v509
  %v612 = vpack.c.b16 %v609, %v608
  %v613 = vpack.c.b16 %v611, %v610
  %v617 = vsel %vm526, %v502, 0
  %v620 = vsel %vm526, %v503, 0
  %v623 = vsel %vm526, %v504, 0
  %v626 = vsel %vm526, %v505, 0
  %628 = vmatprep.subr.bf16.mxu0 0
  %629 = vmatpush1.bf16.msra.mxu0 0
  %630 = vmatprep.subr.bf16.mxu0 0
  %631 = vmatpush1.bf16.msra.mxu0 0
  %632 = vmatprep.subr.bf16.mxu0 0
  %633 = vmatpush1.bf16.msra.mxu0 0
  %634 = vmatprep.subr.bf16.mxu0 0
  %635 = vmatpush1.bf16.msra.mxu0 0
  %636 = vmatprep.subr.bf16.mxu0 0
  %637 = vmatpush1.bf16.msra.mxu0 0
  %638 = vmatprep.subr.bf16.mxu0 0
  %639 = vmatpush1.bf16.msra.mxu0 0
  %640 = vmatprep.subr.bf16.mxu0 0
  %641 = vmatpush1.bf16.msra.mxu0 %v613
  %642 = vmatprep.subr.bf16.mxu0 0
  %643 = vmatpush1.bf16.msra.mxu0 %v612
  %644 = vmatprep.subr.bf16.mxu0 0
  %645 = vmatpush2.bf16.msra.mxu0 0
  %646 = vmatprep.subr.bf16.mxu0 0
  %647 = vmatpush2.bf16.msra.mxu0 0
  %648 = vmatprep.subr.bf16.mxu0 0
  %649 = vmatpush2.bf16.msra.mxu0 0
  %650 = vmatprep.subr.bf16.mxu0 0
  %651 = vmatpush2.bf16.msra.mxu0 0
  %652 = vmatprep.subr.bf16.mxu0 0
  %653 = vmatpush2.bf16.msra.mxu0 0
  %654 = vmatprep.subr.bf16.mxu0 0
  %655 = vmatpush2.bf16.msra.mxu0 0
  %656 = vmatprep.subr.bf16.mxu0 0
  %657 = vmatpush2.bf16.msra.mxu0 0
  %658 = vmatprep.subr.bf16.mxu0 0
  %659 = vmatpush2.bf16.msra.mxu0 0
  %660 = vmatprep.mubr.bf16.mxu0 0
  %661 = vmatmul.mubr.bf16.gmra.mxu0 %v617
  %v662 = vpop.f32.mrf.mxu0
  %v663 = vadd.f32 %v574, %v662
  %v664 = vpop.f32.mrf.mxu0
  %v665 = vpop.f32.mrf.mxu0
  %v666 = vadd.f32 %v577, %v665
  %v667 = vpop.f32.mrf.mxu0
  %668 = vmatprep.mubr.bf16.mxu0 0
  %669 = vmatmul.mubr.bf16.gmra.mxu0 %v620
  %v670 = vpop.f32.mrf.mxu0
  %v671 = vadd.f32 %v582, %v670
  %v672 = vpop.f32.mrf.mxu0
  %v673 = vpop.f32.mrf.mxu0
  %v674 = vadd.f32 %v585, %v673
  %v675 = vpop.f32.mrf.mxu0
  %676 = vmatprep.mubr.bf16.mxu0 0
  %677 = vmatmul.mubr.bf16.gmra.mxu0 %v623
  %v678 = vpop.f32.mrf.mxu0
  %v679 = vadd.f32 %v590, %v678
  %v680 = vpop.f32.mrf.mxu0
  %v681 = vpop.f32.mrf.mxu0
  %v682 = vadd.f32 %v593, %v681
  %v683 = vpop.f32.mrf.mxu0
  %684 = vmatprep.mubr.bf16.mxu0 0
  %685 = vmatmul.mubr.bf16.gmra.mxu0 %v626
  %v686 = vpop.f32.mrf.mxu0
  %v687 = vadd.f32 %v598, %v686
  %v688 = vpop.f32.mrf.mxu0
  %v689 = vpop.f32.mrf.mxu0
  %v690 = vadd.f32 %v601, %v689
  %v691 = vpop.f32.mrf.mxu0
  %692 = vdwg.mxu0
  %v693 = vld [vmem:[%s8] sm:$0x1]
  %v695 = vlaneseq
  %v696 = vshrl.u32 %v695, 7
  %v697 = vsub.s32 0, %v696
  %v698 = vrot.slane %v693, %v697
  %v700 = vadd.f32 %v663, %v698
  %v701 = vadd.f32 %v666, %v698
  %v702 = vadd.f32 %v671, %v698
  %v703 = vadd.f32 %v674, %v698
  %v704 = vadd.f32 %v679, %v698
  %v705 = vadd.f32 %v682, %v698
  %v706 = vadd.f32 %v687, %v698
  %v707 = vadd.f32 %v690, %v698
  %708 = vst.msk [vmem:[%s9] sm:$0xff] %vm526, %v700
  %709 = vst.msk [vmem:[%s9 + $0x8] sm:$0xff] %vm526, %v701
  %710 = vst.msk [vmem:[%s9 + $0x10] sm:$0xff] %vm526, %v702
  %711 = vst.msk [vmem:[%s9 + $0x18] sm:$0xff] %vm526, %v703
  %712 = vst.msk [vmem:[%s9 + $0x20] sm:$0xff] %vm526, %v704
  %713 = vst.msk [vmem:[%s9 + $0x28] sm:$0xff] %vm526, %v705
  %714 = vst.msk [vmem:[%s9 + $0x30] sm:$0xff] %vm526, %v706
  %715 = vst.msk [vmem:[%s9 + $0x38] sm:$0xff] %vm526, %v707
  // Predicated region
  $region38: #{graphsage_allo_forward.1} parent=0 // pred_check
    _
  $region39: #{graphsage_allo_forward.1} parent=0 // pred_check_branch
    %717 = sbr.rel (0) target = $region41
  $region40: #{graphsage_allo_forward.1} parent=0 // pred_region
    _
  $region41: #{graphsage_allo_forward.1} parent=0 // pred_fallthru
    _
  // Predicated region
  $region42: #{graphsage_allo_forward.1} parent=0 // pred_check
    _
  $region43: #{graphsage_allo_forward.1} parent=0 // pred_check_branch
    %719 = sbr.rel (0) target = $region45
  $region44: #{graphsage_allo_forward.1} parent=0 // pred_region
    _
  $region45: #{graphsage_allo_forward.1} parent=0 // pred_fallthru
    _

</llo_original>
